<compile_context>
chip_gen: v6e
topology: v6e:2x2x1
jax: 0.10.0
libtpu: 0.0.40
codegen_flags: <defaults>
</compile_context>

<pallas_src>
import jax
import jax.numpy as jnp
from jax.experimental import pallas as pl
from jax.experimental.pallas import tpu as pltpu

TOK_TILE = 256     # max token rows gathered per grid step
EMBED_ALIGN = 128  # pad embed dim (lane dim) so row DMAs / stores are lane-dense


def _round_up(x, m):
    return (x + m - 1) // m * m


def _gather_kernel(ids_ref, w_hbm, out_ref, copy_sems):
    # ids_ref   : SMEM (n_pad,) int32         -- all (clamped) token ids
    # w_hbm     : HBM  (V, E_pad) f32         -- frozen table, never copied whole
    # out_ref   : VMEM (tok_tile, E_pad) f32  -- this tile's gathered rows
    # copy_sems : DMA semaphores, one per in-flight row copy
    tok_tile = out_ref.shape[0]
    base = pl.program_id(0) * tok_tile

    # Put all row copies in flight (HBM row -> its slot in the output block)...
    @pl.loop(0, tok_tile)
    def _issue(k):
        row = ids_ref[base + k]
        pltpu.make_async_copy(
            w_hbm.at[pl.ds(row, 1), :],      # one table row in HBM
            out_ref.at[pl.ds(k, 1), :],      # straight into the output block
            copy_sems.at[k],
        ).start()

    # ...then drain them; after this the output block is fully written.
    @pl.loop(0, tok_tile)
    def _drain(k):
        pltpu.make_async_copy(
            w_hbm.at[pl.ds(0, 1), :],        # shape-only; wait is on the sem
            out_ref.at[pl.ds(k, 1), :],
            copy_sems.at[k],
        ).wait()


class PallasEmbedding:
    """Frozen-embedding forward matching torch.nn.Embedding(vocab, dim)."""

    def __init__(self, weight):
        # weight: (vocab, embed_dim) float table (frozen / pretrained).
        self.vocab_size, self.embed_dim = weight.shape
        self.e_pad = _round_up(self.embed_dim, EMBED_ALIGN)
        # One-time (hoisted) pad of the frozen table so rows are lane-dense.
        if self.e_pad == self.embed_dim:
            self.w_pad = weight
        else:
            self.w_pad = jnp.pad(weight, ((0, 0), (0, self.e_pad - self.embed_dim)))

    def __call__(self, x):
        B, S = x.shape
        # TODO(synk): torch.nn.Embedding raises on out-of-range ids; we clamp
        # instead so the kernel stays well-defined for untrusted inputs.
        flat = jnp.clip(x.reshape(-1).astype(jnp.int32), 0, self.vocab_size - 1)
        n_tok = flat.shape[0]

        # Token tile: big enough to amortize grid-step cost, but no larger than
        # the (sublane-aligned) token count for tiny inputs.
        tok_tile = min(TOK_TILE, _round_up(n_tok, 8))
        n_pad = _round_up(n_tok, tok_tile)
        flat = jnp.pad(flat, (0, n_pad - n_tok))   # padded tokens gather row 0
        n_tiles = n_pad // tok_tile

        cost = pl.CostEstimate(
            flops=0,
            transcendentals=0,
            # read n_pad table rows + write n_pad output rows + ids
            bytes_accessed=2 * n_pad * self.e_pad * 4 + n_pad * 4,
        )

        out = pl.pallas_call(
            _gather_kernel,
            out_shape=jax.ShapeDtypeStruct((n_pad, self.e_pad), self.w_pad.dtype),
            grid_spec=pltpu.PrefetchScalarGridSpec(
                num_scalar_prefetch=1,                         # flat ids -> SMEM
                grid=(n_tiles,),
                in_specs=[pl.BlockSpec(memory_space=pl.ANY)],  # table stays in HBM
                out_specs=pl.BlockSpec((tok_tile, self.e_pad),
                                       lambda i, ids: (i, 0)),
                scratch_shapes=[pltpu.SemaphoreType.DMA((tok_tile,))],
            ),
            compiler_params=pltpu.CompilerParams(
                dimension_semantics=("parallel",),   # tiles independent -> megacore
            ),
            cost_estimate=cost,
        )(flat, self.w_pad)

        return out[:n_tok, :self.embed_dim].reshape(B, S, self.embed_dim)


if __name__ == "__main__":
    key = jax.random.PRNGKey(0)
    k_w, k_x = jax.random.split(key)

    vocab_size = 64
    embedding_dim = 32
    batch, seq = 2, 8

    # Deterministic "pretrained" embedding table (frozen weights in torch).
    weight = jax.random.normal(k_w, (vocab_size, embedding_dim), dtype=jnp.float32)
    x = jax.random.randint(k_x, (batch, seq), 0, vocab_size, dtype=jnp.int32)

    emb = PallasEmbedding(weight)
    out = jax.block_until_ready(emb(x))

    # Reference check against plain JAX take (same semantics as nn.Embedding).
    ref = jnp.take(weight, x, axis=0)
    assert out.shape == (batch, seq, embedding_dim)
    assert jnp.allclose(out, ref), "mismatch vs reference gather"

    print("KERNEL_OK")
</pallas_src>

<mosaic_0001>
module attributes {stable_mosaic.version = 11 : i64} {
  func.func @_gather_kernel(%arg0: i32, %arg1: memref<16xi32, #tpu.memory_space<smem>>, %arg2: memref<64x128xf32, #tpu.memory_space<any>>, %arg3: memref<16x128xf32, #tpu.memory_space<vmem>>, %arg4: memref<16x!tpu.dma_semaphore, #tpu.memory_space<semaphore_mem>>) attributes {dimension_semantics = [#tpu.dimension_semantics<parallel>], iteration_bounds = array<i64: 1>, scalar_prefetch = 1 : i64, scratch_operands = 1 : i64, tpu.core_type = #tpu.core_type<tc>, window_params = [{}, {transform_indices = @transform_1, window_bounds = array<i64: 16, 128>}]} {
    %c16_i32 = arith.constant 16 : i32
    %0 = arith.muli %arg0, %c16_i32 : i32
    %c0_i32 = arith.constant 0 : i32
    %c16_i32_0 = arith.constant 16 : i32
    %1 = arith.addi %c0_i32, %c16_i32_0 : i32
    %c1_i32 = arith.constant 1 : i32
    scf.for %arg5 = %c0_i32 to %1 step %c1_i32  : i32 {
      %c1_i32_6 = arith.constant 1 : i32
      %3 = arith.muli %arg5, %c1_i32_6 : i32
      %c0_i32_7 = arith.constant 0 : i32
      %4 = arith.addi %c0_i32_7, %3 : i32
      %5 = arith.addi %0, %4 : i32
      %6 = arith.index_cast %5 : i32 to index
      %7 = memref.load %arg1[%6] : memref<16xi32, #tpu.memory_space<smem>>
      %c0_i32_8 = arith.constant 0 : i32
      %8 = tpu.memref_slice %arg2[%7, %c0_i32_8] : memref<64x128xf32, #tpu.memory_space<any>> -> memref<1x128xf32, #tpu.memory_space<any>>
      %c0_i32_9 = arith.constant 0 : i32
      %9 = tpu.memref_slice %arg3[%4, %c0_i32_9] : memref<16x128xf32, #tpu.memory_space<vmem>> -> memref<1x128xf32, #tpu.memory_space<vmem>>
      %10 = tpu.memref_slice %arg4[%4] : memref<16x!tpu.dma_semaphore, #tpu.memory_space<semaphore_mem>> -> memref<1x!tpu.dma_semaphore, #tpu.memory_space<semaphore_mem>>
      %11 = tpu.memref_squeeze %10 : memref<1x!tpu.dma_semaphore, #tpu.memory_space<semaphore_mem>> -> memref<!tpu.dma_semaphore, #tpu.memory_space<semaphore_mem>>
      tpu.enqueue_dma source(%8 : memref<1x128xf32, #tpu.memory_space<any>>) target(%9 : memref<1x128xf32, #tpu.memory_space<vmem>>) target_semaphore(%11 : memref<!tpu.dma_semaphore, #tpu.memory_space<semaphore_mem>>)
    }
    %c16_i32_1 = arith.constant 16 : i32
    %c0_i32_2 = arith.constant 0 : i32
    %c16_i32_3 = arith.constant 16 : i32
    %2 = arith.addi %c0_i32_2, %c16_i32_3 : i32
    %c1_i32_4 = arith.constant 1 : i32
    scf.for %arg5 = %c0_i32_2 to %2 step %c1_i32_4  : i32 {
      %c1_i32_6 = arith.constant 1 : i32
      %3 = arith.muli %arg5, %c1_i32_6 : i32
      %c0_i32_7 = arith.constant 0 : i32
      %4 = arith.addi %c0_i32_7, %3 : i32
      %c0_i32_8 = arith.constant 0 : i32
      %c0_i32_9 = arith.constant 0 : i32
      %5 = tpu.memref_slice %arg2[%c0_i32_8, %c0_i32_9] : memref<64x128xf32, #tpu.memory_space<any>> -> memref<1x128xf32, #tpu.memory_space<any>>
      %c0_i32_10 = arith.constant 0 : i32
      %6 = tpu.memref_slice %arg3[%4, %c0_i32_10] : memref<16x128xf32, #tpu.memory_space<vmem>> -> memref<1x128xf32, #tpu.memory_space<vmem>>
      %7 = tpu.memref_slice %arg4[%4] : memref<16x!tpu.dma_semaphore, #tpu.memory_space<semaphore_mem>> -> memref<1x!tpu.dma_semaphore, #tpu.memory_space<semaphore_mem>>
      %8 = tpu.memref_squeeze %7 : memref<1x!tpu.dma_semaphore, #tpu.memory_space<semaphore_mem>> -> memref<!tpu.dma_semaphore, #tpu.memory_space<semaphore_mem>>
      tpu.wait_dma2 semaphore(%8 : memref<!tpu.dma_semaphore, #tpu.memory_space<semaphore_mem>>) src(%5 : memref<1x128xf32, #tpu.memory_space<any>>) dst(%6 : memref<1x128xf32, #tpu.memory_space<vmem>>)
    }
    %c16_i32_5 = arith.constant 16 : i32
    return
  }
  func.func @transform_1(%arg0: i32, %arg1: memref<16xi32, #tpu.memory_space<smem>>) -> (i32, i32) {
    %c0_i32 = arith.constant 0 : i32
    %c0_i32_0 = arith.constant 0 : i32
    return %arg0, %c0_i32 : i32, i32
  }
}

</mosaic_0001>

<llo_original>
// kernel: tpu_custom_call.1
$region0: #{tpu_custom_call.1}
  #allocation0 [shape = 'u32[]', space=smem, size = 0x4, offset = 0x4, fixed_abs, tag = 'smem constant byte address 0x4 - core index']
  #allocation1 [shape = 'u32[144,128]{1,0:T(1,128)}', space=vmem, size = 0x12000, scoped, tag = 'internal scratch']
  #allocation2 [shape = 's32[16]{0}', space=sflag, size = 0x40, scoped, tag = 'scratch operand']
  #allocation3 [shape = 's32[1]{0}', space=sflag, size = 0x4, scoped, tag = 'scoped memory for tpu_custom_call.1']
  #allocation4 [shape = 'u8[512]{0}', space=smem, size = 0x200, scoped, tag = 'prefetched SMEM operand 0']
  #allocation7 [shape = 's32[]', space=sflag, size = 0x4, offset = 0, fixed_abs, tag = 'sflag constant byte address 0x0 - dummy sync flag']
  #allocation8 [shape = 's32[]', space=sflag, size = 0x4, offset = 0, fixed_abs, tag = 'sflag constant byte address 0x0 - dummy sync flag']
  #allocation9 [shape = 'u32[]', space=smem, size = 0x4, offset = 0x44, fixed_abs, tag = 'smem constant byte address 0x44 - assertion arg 0']
  #allocation10 [shape = 'u32[]', space=smem, size = 0x4, offset = 0x48, fixed_abs, tag = 'smem constant byte address 0x48 - assertion arg 1']
  %s0 = inlined_call_operand.hbm [shape: s32[16], index: 0, kind: input, shape index: {}]
  %s1 = inlined_call_operand.hbm [shape: f32[64,128], index: 1, kind: input, shape index: {}]
  %s2 = inlined_call_operand.hbm [shape: f32[16,128], index: 2, kind: output, shape index: {}]
  %s3 = sld [smem:[#allocation0]]
  $region28: #{tpu_custom_call.1} parent=0
    _
  %s5 = ssub.s32 1, %s3
  %s6 = scalar_select 0, %s5, %s3
  %8 = dma.hbm_to_smem %s0, 16, [#allocation4], [#allocation3]
  %9 = dma.done [#allocation3], 16
  %10 = sfence
  $region1: #{tpu_custom_call.1} parent=0
    #allocation5 [shape = 'u8[8192]{0}', space=vmem, size = 0x2000, scoped, tag = 'output window, operand 0, single buffered']
    #allocation6 [shape = 's32[1]{0}', space=sflag, size = 0x4, scoped, tag = 'scoped memory for tpu_custom_call.1']
    %11 = vsyncpa [#allocation6], 0
    %s12 = smul.u32 0, 16
    loop: start=0, step=1, limit=16
    $region2: #{tpu_custom_call.1} parent=1 // loop_pre_header
      _
    $region3: #{tpu_custom_call.1} parent=1 // loop_header
      %s14 = sphi 0, %s18
      %p15 = scmp.ge.s32.totalorder %s14, 16
    $region4: #{tpu_custom_call.1} parent=1 // loop_header_branch
      %17 = sbr.rel (%p15) target = $region8
    $region5: #{tpu_custom_call.1} parent=1 // loop_body
      %s19 = sadd.s32 %s12, %s14
      %s20 = sld [smem:[#allocation4 + %s19]]
      %s21 = smul.addr %s20, 16
      %s22 = scalar_lea.hbm %s1, %s21
      %s23 = scalar_lea.vmem [#allocation5], %s14
      %s24 = scalar_lea.sflag [#allocation2], %s14
      // Predicated region
      $region9: #{tpu_custom_call.1} parent=5 // pred_check
        _
      $region10: #{tpu_custom_call.1} parent=5 // pred_check_branch
        %26 = sbr.rel target = $region12
      $region11: #{tpu_custom_call.1} parent=5 // pred_region
        %27 = sst [smem:[#allocation9]] [#allocation8]
        %28 = sst [smem:[#allocation10]] [#allocation7]
      $region12: #{tpu_custom_call.1} parent=5 // pred_fallthru
        _
      %30 = shalt.err (0)
      %s32 = sshll.u32 %s23, 4
      %s33 = int_to_ptr.vmem [resolvable:$true] %s32
      %35 = dma.hbm_to_vmem [thread:$0]  %s22, 16, %s33, %s24
    $region6: #{tpu_custom_call.1} parent=1 // loop_footer
      %s18 = sadd.s32 1, %s14
    $region7: #{tpu_custom_call.1} parent=1 // loop_footer_branch
      %13 = sbr.rel target = $region3
    $region8: #{tpu_custom_call.1} parent=1 // loop_exit
      _
    loop: start=0, step=1, limit=16
    $region13: #{tpu_custom_call.1} parent=1 // loop_pre_header
      _
    $region14: #{tpu_custom_call.1} parent=1 // loop_header
      %s37 = sphi 0, %s41
      %p38 = scmp.ge.s32.totalorder %s37, 16
    $region15: #{tpu_custom_call.1} parent=1 // loop_header_branch
      %40 = sbr.rel (%p38) target = $region19
    $region16: #{tpu_custom_call.1} parent=1 // loop_body
      %s42 = scalar_lea.sflag [#allocation2], %s37
      %s43 = smul.u32 1, 1
      %s44 = sshll.u32 %s43, 4
      %45 = dma.done %s42, %s44
    $region17: #{tpu_custom_call.1} parent=1 // loop_footer
      %s41 = sadd.s32 1, %s37
    $region18: #{tpu_custom_call.1} parent=1 // loop_footer_branch
      %36 = sbr.rel target = $region14
    $region19: #{tpu_custom_call.1} parent=1 // loop_exit
      _
    // Predicated region
    $region20: #{tpu_custom_call.1} parent=1 // pred_check
      _
    $region21: #{tpu_custom_call.1} parent=1 // pred_check_branch
      %47 = sbr.rel (0) target = $region23
    $region22: #{tpu_custom_call.1} parent=1 // pred_region
      %s49 = ssub.s32 256, 256
      %50 = vsyncadd [#allocation6], %s49
      %s51 = sshll.u32 [#allocation5], 4
      %s52 = int_to_ptr.vmem [resolvable:$true] %s51
      %57 = dma.vmem_to_hbm [thread:$0]  %s52, 256, %s2, [#allocation6], 128, 128, 8
    $region23: #{tpu_custom_call.1} parent=1 // pred_fallthru
      _
    // Predicated region
    $region24: #{tpu_custom_call.1} parent=1 // pred_check
      _
    $region25: #{tpu_custom_call.1} parent=1 // pred_check_branch
      %59 = sbr.rel (0) target = $region27
    $region26: #{tpu_custom_call.1} parent=1 // pred_region
      %60 = dma.done [#allocation6], 256
    $region27: #{tpu_custom_call.1} parent=1 // pred_fallthru
      _
    %61 = vsyncpa [#allocation6], 1
  %62 = vsyncmov [#allocation2]
  %s63 = vpop.sfrf %62
  %p64 = scmp.eq.s32.totalorder %s63, 0
  %p65 = pneg %p64
  %67 = shalt.err (%p65)
  %s68 = scalar_lea.sflag [#allocation2], 1
  %69 = vsyncmov %s68
  %s70 = vpop.sfrf %69
  %p71 = scmp.eq.s32.totalorder %s70, 0
  %p72 = pneg %p71
  %74 = shalt.err (%p72)
  %s75 = scalar_lea.sflag [#allocation2], 2
  %76 = vsyncmov %s75
  %s77 = vpop.sfrf %76
  %p78 = scmp.eq.s32.totalorder %s77, 0
  %p79 = pneg %p78
  %81 = shalt.err (%p79)
  %s82 = scalar_lea.sflag [#allocation2], 3
  %83 = vsyncmov %s82
  %s84 = vpop.sfrf %83
  %p85 = scmp.eq.s32.totalorder %s84, 0
  %p86 = pneg %p85
  %88 = shalt.err (%p86)
  %s89 = scalar_lea.sflag [#allocation2], 4
  %90 = vsyncmov %s89
  %s91 = vpop.sfrf %90
  %p92 = scmp.eq.s32.totalorder %s91, 0
  %p93 = pneg %p92
  %95 = shalt.err (%p93)
  %s96 = scalar_lea.sflag [#allocation2], 5
  %97 = vsyncmov %s96
  %s98 = vpop.sfrf %97
  %p99 = scmp.eq.s32.totalorder %s98, 0
  %p100 = pneg %p99
  %102 = shalt.err (%p100)
  %s103 = scalar_lea.sflag [#allocation2], 6
  %104 = vsyncmov %s103
  %s105 = vpop.sfrf %104
  %p106 = scmp.eq.s32.totalorder %s105, 0
  %p107 = pneg %p106
  %109 = shalt.err (%p107)
  %s110 = scalar_lea.sflag [#allocation2], 7
  %111 = vsyncmov %s110
  %s112 = vpop.sfrf %111
  %p113 = scmp.eq.s32.totalorder %s112, 0
  %p114 = pneg %p113
  %116 = shalt.err (%p114)
  %s117 = scalar_lea.sflag [#allocation2], 8
  %118 = vsyncmov %s117
  %s119 = vpop.sfrf %118
  %p120 = scmp.eq.s32.totalorder %s119, 0
  %p121 = pneg %p120
  %123 = shalt.err (%p121)
  %s124 = scalar_lea.sflag [#allocation2], 9
  %125 = vsyncmov %s124
  %s126 = vpop.sfrf %125
  %p127 = scmp.eq.s32.totalorder %s126, 0
  %p128 = pneg %p127
  %130 = shalt.err (%p128)
  %s131 = scalar_lea.sflag [#allocation2], 10
  %132 = vsyncmov %s131
  %s133 = vpop.sfrf %132
  %p134 = scmp.eq.s32.totalorder %s133, 0
  %p135 = pneg %p134
  %137 = shalt.err (%p135)
  %s138 = scalar_lea.sflag [#allocation2], 11
  %139 = vsyncmov %s138
  %s140 = vpop.sfrf %139
  %p141 = scmp.eq.s32.totalorder %s140, 0
  %p142 = pneg %p141
  %144 = shalt.err (%p142)
  %s145 = scalar_lea.sflag [#allocation2], 12
  %146 = vsyncmov %s145
  %s147 = vpop.sfrf %146
  %p148 = scmp.eq.s32.totalorder %s147, 0
  %p149 = pneg %p148
  %151 = shalt.err (%p149)
  %s152 = scalar_lea.sflag [#allocation2], 13
  %153 = vsyncmov %s152
  %s154 = vpop.sfrf %153
  %p155 = scmp.eq.s32.totalorder %s154, 0
  %p156 = pneg %p155
  %158 = shalt.err (%p156)
  %s159 = scalar_lea.sflag [#allocation2], 14
  %160 = vsyncmov %s159
  %s161 = vpop.sfrf %160
  %p162 = scmp.eq.s32.totalorder %s161, 0
  %p163 = pneg %p162
  %165 = shalt.err (%p163)
  %s166 = scalar_lea.sflag [#allocation2], 15
  %167 = vsyncmov %s166
  %s168 = vpop.sfrf %167
  %p169 = scmp.eq.s32.totalorder %s168, 0
  %p170 = pneg %p169
  %172 = shalt.err (%p170)

</llo_original>
